<compile_context>
chip_gen: v7x
topology: tpu7x:2x2x1
jax: 0.10.0
libtpu: 0.0.40
codegen_flags: <defaults>
</compile_context>

<pallas_src>
import functools

import jax
import jax.numpy as jnp
import numpy as np
from jax.experimental import pallas as pl
from jax.experimental.pallas import tpu as pltpu


def _cdiv(a: int, b: int) -> int:
    return -(-a // b)


def _round_up(a: int, m: int) -> int:
    return _cdiv(a, m) * m


def _scalar_metric_kernel(x_ref, w1_ref, b1_ref, w2_ref, b2_ref, w3_ref, b3_ref,
                          o_ref, *, eps: float):
    # Batch-on-lanes layout: x tile is (n_dims, bt); weights keep torch (out, in).
    xt = x_ref[...]                                                        # (n_dims, bt)
    h1 = jnp.dot(w1_ref[...], xt, preferred_element_type=jnp.float32) + b1_ref[...]
    h1 = jnp.maximum(h1, 0.0)                                              # (H, bt) lane-dense
    h2 = jnp.dot(w2_ref[...], h1, preferred_element_type=jnp.float32) + b2_ref[...]
    h2 = jnp.maximum(h2, 0.0)                                              # (H, bt)
    # Third Linear has a single output row: VPU multiply + sublane reduce
    # instead of an M=1 MXU pass.  b3 comes from SMEM, eps is baked in.
    s = jnp.sum(h2 * w3_ref[...], axis=0, keepdims=True) + b3_ref[0, 0]    # (1, bt)
    o_ref[...] = jnp.exp(s) + eps                                          # lane-dense store


def _choose_tile(B: int, block_b: int, lane: int = 128):
    """Pick a lane-aligned batch tile: >=2 grid steps when B > 128 (v7x megacore),
    tiles dividing B nearly evenly (avoid ~2x padding blow-up)."""
    bt_cap = min(block_b, _round_up(B, lane))
    if B > lane:
        bt_cap = min(bt_cap, _round_up(_cdiv(B, 2), lane))
    n_tiles = _cdiv(B, bt_cap)
    bt = _round_up(_cdiv(B, n_tiles), lane)
    b_pad = n_tiles * bt
    return bt, b_pad, n_tiles


def scalar_metric_forward(x, params, *, eps: float = 1e-12, block_b: int = 4096):
    """x: (B, n_dims) float32. params: dict w1,b1,w2,b2,w3,b3 in torch Linear shapes."""
    B, n_dims = x.shape
    n_hidden = params["w1"].shape[0]

    # Torch Linear weight (out, in) already matches the batch-on-lanes layout.
    w1 = params["w1"]                               # (n_hidden, n_dims)
    b1 = params["b1"].reshape(n_hidden, 1)
    w2 = params["w2"]                               # (n_hidden, n_hidden)
    b2 = params["b2"].reshape(n_hidden, 1)
    w3 = params["w3"].reshape(n_hidden, 1)          # column for the sublane reduce
    b3 = params["b3"].reshape(1, 1)                 # SMEM scalar

    bt, b_pad, n_tiles = _choose_tile(B, block_b)

    # Batch on lanes: transpose + zero-pad to (n_dims, b_pad).
    x_t = jnp.zeros((n_dims, b_pad), x.dtype).at[:, :B].set(x.T)

    kernel = functools.partial(_scalar_metric_kernel, eps=eps)

    def resident(shape):
        return pl.BlockSpec(shape, lambda i: (0,) * len(shape))

    s_row = pl.pallas_call(
        kernel,
        out_shape=jax.ShapeDtypeStruct((1, b_pad), jnp.float32),
        grid=(n_tiles,),
        in_specs=[
            pl.BlockSpec((n_dims, bt), lambda i: (0, i)),     # x_t: tiled over batch lanes
            resident((n_hidden, n_dims)),                     # w1 (VMEM-resident)
            resident((n_hidden, 1)),                          # b1
            resident((n_hidden, n_hidden)),                   # w2
            resident((n_hidden, 1)),                          # b2
            resident((n_hidden, 1)),                          # w3 column
            pl.BlockSpec(memory_space=pltpu.MemorySpace.SMEM),  # b3 scalar
        ],
        out_specs=pl.BlockSpec((1, bt), lambda i: (0, i)),
        compiler_params=pltpu.CompilerParams(
            dimension_semantics=("parallel",),
            vmem_limit_bytes=32 * 1024 * 1024,
        ),
    )(x_t, w1, b1, w2, b2, w3, b3)

    # Strip batch padding; diag_embed(scalar.repeat(1, n)) == s * eye as a
    # trailing XLA broadcast (kernel only writes the 4-byte scalar per sample).
    s = s_row[0, :B]                                          # (B,)
    return s[:, None, None] * jnp.eye(n_dims, dtype=s.dtype)  # (B, n_dims, n_dims)


def _reference_forward(x, params, eps):
    h1 = jnp.maximum(x @ params["w1"].T + params["b1"], 0.0)
    h2 = jnp.maximum(h1 @ params["w2"].T + params["b2"], 0.0)
    s = jnp.exp(h2 @ params["w3"].T + params["b3"]) + eps                 # (B, 1)
    n_dims = x.shape[1]
    rep = jnp.tile(s, (1, n_dims))                                        # (B, n_dims)
    return jax.vmap(jnp.diag)(rep)                                        # (B, n_dims, n_dims)


if __name__ == "__main__":
    B, n_dims, n_hidden = 8, 4, 32
    eps = 1e-12

    key = jax.random.PRNGKey(0)
    kx, k1, k2, k3, k4, k5, k6 = jax.random.split(key, 7)

    x = jax.random.normal(kx, (B, n_dims), dtype=jnp.float32)

    # Deterministic synthetic parameters (torch nn.Linear shapes: (out, in) / (out,))
    params = {
        "w1": 0.3 * jax.random.normal(k1, (n_hidden, n_dims), dtype=jnp.float32),
        "b1": 0.1 * jax.random.normal(k2, (n_hidden,), dtype=jnp.float32),
        "w2": 0.3 * jax.random.normal(k3, (n_hidden, n_hidden), dtype=jnp.float32),
        "b2": 0.1 * jax.random.normal(k4, (n_hidden,), dtype=jnp.float32),
        "w3": 0.3 * jax.random.normal(k5, (1, n_hidden), dtype=jnp.float32),
        "b3": 0.1 * jax.random.normal(k6, (1,), dtype=jnp.float32),
    }

    out = scalar_metric_forward(x, params, eps=eps)
    out = jax.block_until_ready(out)

    ref = _reference_forward(x, params, eps)
    assert out.shape == (B, n_dims, n_dims)
    assert np.allclose(np.asarray(out), np.asarray(ref), rtol=1e-5, atol=1e-6)

    print("KERNEL_OK")
</pallas_src>

<mosaic_0001>
module attributes {stable_mosaic.version = 11 : i64} {
  func.func @_scalar_metric_kernel(%arg0: i32, %arg1: memref<4x128xf32, #tpu.memory_space<vmem>>, %arg2: memref<32x4xf32, #tpu.memory_space<vmem>>, %arg3: memref<32x1xf32, #tpu.memory_space<vmem>>, %arg4: memref<32x32xf32, #tpu.memory_space<vmem>>, %arg5: memref<32x1xf32, #tpu.memory_space<vmem>>, %arg6: memref<32x1xf32, #tpu.memory_space<vmem>>, %arg7: memref<1x1xf32, #tpu.memory_space<smem>>, %arg8: memref<1x128xf32, #tpu.memory_space<vmem>>) attributes {dimension_semantics = [#tpu.dimension_semantics<parallel>], iteration_bounds = array<i64: 1>, scalar_prefetch = 0 : i64, scratch_operands = 0 : i64, tpu.core_type = #tpu.core_type<tc>, window_params = [{transform_indices = @transform_0, window_bounds = array<i64: 4, 128>}, {pipeline_mode = #tpu.pipeline_mode<synchronous>, transform_indices = @transform_1, window_bounds = array<i64: 32, 4>}, {pipeline_mode = #tpu.pipeline_mode<synchronous>, transform_indices = @transform_2, window_bounds = array<i64: 32, 1>}, {pipeline_mode = #tpu.pipeline_mode<synchronous>, transform_indices = @transform_3, window_bounds = array<i64: 32, 32>}, {pipeline_mode = #tpu.pipeline_mode<synchronous>, transform_indices = @transform_4, window_bounds = array<i64: 32, 1>}, {pipeline_mode = #tpu.pipeline_mode<synchronous>, transform_indices = @transform_5, window_bounds = array<i64: 32, 1>}, {transform_indices = @transform_6, window_bounds = array<i64: 1, 1>}, {transform_indices = @transform_7, window_bounds = array<i64: 1, 128>}]} {
    %c0 = arith.constant 0 : index
    %c0_0 = arith.constant 0 : index
    %0 = vector.load %arg1[%c0, %c0_0] : memref<4x128xf32, #tpu.memory_space<vmem>>, vector<4x128xf32>
    %c0_1 = arith.constant 0 : index
    %c0_2 = arith.constant 0 : index
    %1 = vector.load %arg2[%c0_1, %c0_2] : memref<32x4xf32, #tpu.memory_space<vmem>>, vector<32x4xf32>
    %cst = arith.constant dense<0.000000e+00> : vector<32x128xf32>
    %2 = tpu.matmul %1, %0, %cst {dimension_numbers = #tpu.dot_dimension_numbers<[1], [0], [0], [1], [0, 0, 1, 1], [], []>} : vector<32x4xf32>, vector<4x128xf32>, vector<32x128xf32> -> vector<32x128xf32>
    %c0_3 = arith.constant 0 : index
    %c0_4 = arith.constant 0 : index
    %3 = vector.load %arg3[%c0_3, %c0_4] : memref<32x1xf32, #tpu.memory_space<vmem>>, vector<32x1xf32>
    %4 = vector.broadcast %3 : vector<32x1xf32> to vector<32x128xf32>
    %5 = arith.addf %2, %4 : vector<32x128xf32>
    %cst_5 = arith.constant 0.000000e+00 : f32
    %6 = vector.broadcast %cst_5 : f32 to vector<32x128xf32>
    %7 = arith.maximumf %5, %6 : vector<32x128xf32>
    %c0_6 = arith.constant 0 : index
    %c0_7 = arith.constant 0 : index
    %8 = vector.load %arg4[%c0_6, %c0_7] : memref<32x32xf32, #tpu.memory_space<vmem>>, vector<32x32xf32>
    %cst_8 = arith.constant dense<0.000000e+00> : vector<32x128xf32>
    %9 = tpu.matmul %8, %7, %cst_8 {dimension_numbers = #tpu.dot_dimension_numbers<[1], [0], [0], [1], [0, 0, 1, 1], [], []>} : vector<32x32xf32>, vector<32x128xf32>, vector<32x128xf32> -> vector<32x128xf32>
    %c0_9 = arith.constant 0 : index
    %c0_10 = arith.constant 0 : index
    %10 = vector.load %arg5[%c0_9, %c0_10] : memref<32x1xf32, #tpu.memory_space<vmem>>, vector<32x1xf32>
    %11 = vector.broadcast %10 : vector<32x1xf32> to vector<32x128xf32>
    %12 = arith.addf %9, %11 : vector<32x128xf32>
    %cst_11 = arith.constant 0.000000e+00 : f32
    %13 = vector.broadcast %cst_11 : f32 to vector<32x128xf32>
    %14 = arith.maximumf %12, %13 : vector<32x128xf32>
    %c0_12 = arith.constant 0 : index
    %c0_13 = arith.constant 0 : index
    %15 = vector.load %arg6[%c0_12, %c0_13] : memref<32x1xf32, #tpu.memory_space<vmem>>, vector<32x1xf32>
    %16 = vector.broadcast %15 : vector<32x1xf32> to vector<32x128xf32>
    %17 = arith.mulf %14, %16 : vector<32x128xf32>
    %cst_14 = arith.constant dense<0.000000e+00> : vector<128xf32>
    %18 = vector.multi_reduction <add>, %17, %cst_14 [0] : vector<32x128xf32> to vector<128xf32>
    %19 = vector.shape_cast %18 : vector<128xf32> to vector<1x128xf32>
    %c0_15 = arith.constant 0 : index
    %c0_16 = arith.constant 0 : index
    %20 = memref.load %arg7[%c0_15, %c0_16] : memref<1x1xf32, #tpu.memory_space<smem>>
    %21 = vector.broadcast %20 : f32 to vector<1x128xf32>
    %22 = arith.addf %19, %21 : vector<1x128xf32>
    %23 = math.exp %22 : vector<1x128xf32>
    %cst_17 = arith.constant 9.99999996E-13 : f32
    %24 = vector.broadcast %cst_17 : f32 to vector<1x128xf32>
    %25 = arith.addf %23, %24 : vector<1x128xf32>
    %c0_18 = arith.constant 0 : index
    %c0_19 = arith.constant 0 : index
    %26 = vector.load %arg8[%c0_18, %c0_19] : memref<1x128xf32, #tpu.memory_space<vmem>>, vector<1x128xf32>
    tpu.vector_store %arg8[%c0_18, %c0_19], %25 {strides = array<i32>} : memref<1x128xf32, #tpu.memory_space<vmem>>, vector<1x128xf32>,
    return
  }
  func.func @transform_0(%arg0: i32) -> (i32, i32) {
    %c0_i32 = arith.constant 0 : i32
    %c0_i32_0 = arith.constant 0 : i32
    return %c0_i32, %arg0 : i32, i32
  }
  func.func @transform_1(%arg0: i32) -> (i32, i32) {
    %c0_i32 = arith.constant 0 : i32
    %c0_i32_0 = arith.constant 0 : i32
    %c0_i32_1 = arith.constant 0 : i32
    return %c0_i32, %c0_i32_0 : i32, i32
  }
  func.func @transform_2(%arg0: i32) -> (i32, i32) {
    %c0_i32 = arith.constant 0 : i32
    %c0_i32_0 = arith.constant 0 : i32
    %c0_i32_1 = arith.constant 0 : i32
    return %c0_i32, %c0_i32_0 : i32, i32
  }
  func.func @transform_3(%arg0: i32) -> (i32, i32) {
    %c0_i32 = arith.constant 0 : i32
    %c0_i32_0 = arith.constant 0 : i32
    %c0_i32_1 = arith.constant 0 : i32
    return %c0_i32, %c0_i32_0 : i32, i32
  }
  func.func @transform_4(%arg0: i32) -> (i32, i32) {
    %c0_i32 = arith.constant 0 : i32
    %c0_i32_0 = arith.constant 0 : i32
    %c0_i32_1 = arith.constant 0 : i32
    return %c0_i32, %c0_i32_0 : i32, i32
  }
  func.func @transform_5(%arg0: i32) -> (i32, i32) {
    %c0_i32 = arith.constant 0 : i32
    %c0_i32_0 = arith.constant 0 : i32
    %c0_i32_1 = arith.constant 0 : i32
    return %c0_i32, %c0_i32_0 : i32, i32
  }
  func.func @transform_6(%arg0: i32) -> (i32, i32) {
    %c0_i32 = arith.constant 0 : i32
    %c0_i32_0 = arith.constant 0 : i32
    %c0_i32_1 = arith.constant 0 : i32
    return %c0_i32, %c0_i32_0 : i32, i32
  }
  func.func @transform_7(%arg0: i32) -> (i32, i32) {
    %c0_i32 = arith.constant 0 : i32
    %c0_i32_0 = arith.constant 0 : i32
    return %c0_i32, %arg0 : i32, i32
  }
}

</mosaic_0001>

<llo_original>
// kernel: tpu_custom_call.1
$region0: #{tpu_custom_call.1}
  #allocation0 [shape = 'u32[]', space=smem, size = 0x4, offset = 0x4, fixed_abs, tag = 'smem constant byte address 0x4 - core index']
  #allocation1 [shape = 'u32[144,128]{1,0:T(1,128)}', space=vmem, size = 0x12000, scoped, tag = 'internal scratch']
  #allocation2 [shape = 'f32[1,1]{1,0:T(1,128)S(6)}', space=smem, size = 0x200, scoped, tag = 'scoped memory for tpu_custom_call.1']
  %s0 = inlined_call_operand.vmem [shape: f32[4,128], index: 0, kind: input, shape index: {}]
  %s1 = inlined_call_operand.vmem [shape: f32[32,4], index: 1, kind: input, shape index: {}]
  %s2 = inlined_call_operand.vmem [shape: f32[32,1], index: 2, kind: input, shape index: {}]
  %s3 = inlined_call_operand.vmem [shape: f32[32,32], index: 3, kind: input, shape index: {}]
  %s4 = inlined_call_operand.vmem [shape: f32[32,1], index: 4, kind: input, shape index: {}]
  %s5 = inlined_call_operand.vmem [shape: f32[32,1], index: 5, kind: input, shape index: {}]
  %s6 = inlined_call_operand.<no memory space> [shape: f32[1,1], index: 6, kind: input, shape index: {}]
  %s7 = inlined_call_operand.hbm [shape: f32[1,128], index: 7, kind: output, shape index: {}]
  %s8 = sld [smem:[#allocation0]]
  $region38: #{tpu_custom_call.1} parent=0
    _
  %s10 = ssub.s32 1, %s8
  %s11 = scalar_select 0, %s10, %s8
  %12 = sst [smem:[#allocation2]] %s6
  $region1: #{tpu_custom_call.1} parent=0
    #allocation3 [shape = 'u8[512]{0}', space=vmem, size = 0x400, scoped, tag = 'output window, operand 0, single buffered']
    #allocation4 [shape = 's32[1]{0}', space=sflag, size = 0x4, scoped, tag = 'scoped memory for tpu_custom_call.1']
    %13 = vsyncpa [#allocation4], 0
    // Predicated region
    $region2: #{tpu_custom_call.1} parent=1 // pred_check
      _
    $region3: #{tpu_custom_call.1} parent=1 // pred_check_branch
      %15 = sbr.rel (0) target = $region5
    $region4: #{tpu_custom_call.1} parent=1 // pred_region
      _
    $region5: #{tpu_custom_call.1} parent=1 // pred_fallthru
      _
    // Predicated region
    $region6: #{tpu_custom_call.1} parent=1 // pred_check
      _
    $region7: #{tpu_custom_call.1} parent=1 // pred_check_branch
      %17 = sbr.rel (0) target = $region9
    $region8: #{tpu_custom_call.1} parent=1 // pred_region
      _
    $region9: #{tpu_custom_call.1} parent=1 // pred_fallthru
      _
    // Predicated region
    $region10: #{tpu_custom_call.1} parent=1 // pred_check
      _
    $region11: #{tpu_custom_call.1} parent=1 // pred_check_branch
      %19 = sbr.rel (0) target = $region13
    $region12: #{tpu_custom_call.1} parent=1 // pred_region
      _
    $region13: #{tpu_custom_call.1} parent=1 // pred_fallthru
      _
    // Predicated region
    $region14: #{tpu_custom_call.1} parent=1 // pred_check
      _
    $region15: #{tpu_custom_call.1} parent=1 // pred_check_branch
      %21 = sbr.rel (0) target = $region17
    $region16: #{tpu_custom_call.1} parent=1 // pred_region
      _
    $region17: #{tpu_custom_call.1} parent=1 // pred_fallthru
      _
    // Predicated region
    $region18: #{tpu_custom_call.1} parent=1 // pred_check
      _
    $region19: #{tpu_custom_call.1} parent=1 // pred_check_branch
      %23 = sbr.rel (0) target = $region21
    $region20: #{tpu_custom_call.1} parent=1 // pred_region
      _
    $region21: #{tpu_custom_call.1} parent=1 // pred_fallthru
      _
    // Predicated region
    $region22: #{tpu_custom_call.1} parent=1 // pred_check
      _
    $region23: #{tpu_custom_call.1} parent=1 // pred_check_branch
      %25 = sbr.rel (0) target = $region25
    $region24: #{tpu_custom_call.1} parent=1 // pred_region
      _
    $region25: #{tpu_custom_call.1} parent=1 // pred_fallthru
      _
    // Predicated region
    $region26: #{tpu_custom_call.1} parent=1 // pred_check
      _
    $region27: #{tpu_custom_call.1} parent=1 // pred_check_branch
      %27 = sbr.rel (0) target = $region29
    $region28: #{tpu_custom_call.1} parent=1 // pred_region
      _
    $region29: #{tpu_custom_call.1} parent=1 // pred_fallthru
      _
    %v28 = vld [vmem:[%s0] sm:$0xf]
    %v29 = vld [vmem:[%s1] sm:$0xff]
    %v30 = vld [vmem:[%s1 + $0x8] sm:$0xff]
    %v31 = vld [vmem:[%s1 + $0x10] sm:$0xff]
    %v32 = vld [vmem:[%s1 + $0x18] sm:$0xff]
    %v33 = vld [vmem:[%s2] sm:$0xff]
    %v34 = vld [vmem:[%s2 + $0x8] sm:$0xff]
    %v35 = vld [vmem:[%s2 + $0x10] sm:$0xff]
    %v36 = vld [vmem:[%s2 + $0x18] sm:$0xff]
    %38 = vset.pattern.permute.xlu0 0
    %39 = vperm.xlu0 %38, %v33
    %v40 = vpop.permute.xlu0 %39
    %43 = vset.pattern.permute.xlu0 0
    %44 = vperm.xlu0 %43, %v34
    %v45 = vpop.permute.xlu0 %44
    %48 = vset.pattern.permute.xlu0 0
    %49 = vperm.xlu0 %48, %v35
    %v50 = vpop.permute.xlu0 %49
    %53 = vset.pattern.permute.xlu0 0
    %54 = vperm.xlu0 %53, %v36
    %v55 = vpop.permute.xlu0 %54
    %vm57 = vcmask 31744
    %v59 = vsel %vm57, %v29, 0
    %v62 = vsel %vm57, %v30, 0
    %v65 = vsel %vm57, %v31, 0
    %v68 = vsel %vm57, %v32, 0
    %vm70 = vcmask 1043456
    %v72 = vsel %vm70, %v28, 0
    %74 = vmatprep.subr.mxu0 0.0
    %75 = vmatpush1.msra.mxu0 %v72
    %76 = vmatprep.subr.mxu0 0.0
    %77 = vmatpush1.msra.mxu0 0.0
    %78 = vmatprep.subr.mxu0 0.0
    %79 = vmatpush1.msra.mxu0 0.0
    %80 = vmatprep.subr.mxu0 0.0
    %81 = vmatpush1.msra.mxu0 0.0
    %82 = vmatprep.subr.mxu0 0.0
    %83 = vmatpush1.msra.mxu0 0.0
    %84 = vmatprep.subr.mxu0 0.0
    %85 = vmatpush1.msra.mxu0 0.0
    %86 = vmatprep.subr.mxu0 0.0
    %87 = vmatpush1.msra.mxu0 0.0
    %88 = vmatprep.subr.mxu0 0.0
    %89 = vmatpush1.msra.mxu0 0.0
    %90 = vmatprep.subr.mxu0 0.0
    %91 = vmatpush1.msra.mxu0 0.0
    %92 = vmatprep.subr.mxu0 0.0
    %93 = vmatpush1.msra.mxu0 0.0
    %94 = vmatprep.subr.mxu0 0.0
    %95 = vmatpush1.msra.mxu0 0.0
    %96 = vmatprep.subr.mxu0 0.0
    %97 = vmatpush1.msra.mxu0 0.0
    %98 = vmatprep.subr.mxu0 0.0
    %99 = vmatpush1.msra.mxu0 0.0
    %100 = vmatprep.subr.mxu0 0.0
    %101 = vmatpush1.msra.mxu0 0.0
    %102 = vmatprep.subr.mxu0 0.0
    %103 = vmatpush1.msra.mxu0 0.0
    %104 = vmatprep.subr.mxu0 0.0
    %105 = vmatpush1.msra.mxu0 0.0
    %106 = vmatprep.subr.mxu0 0.0
    %107 = vmatpush1.msra.mxu0 0.0
    %108 = vmatprep.subr.mxu0 0.0
    %109 = vmatpush1.msra.mxu0 0.0
    %110 = vmatprep.subr.mxu0 0.0
    %111 = vmatpush1.msra.mxu0 0.0
    %112 = vmatprep.subr.mxu0 0.0
    %113 = vmatpush1.msra.mxu0 0.0
    %114 = vmatprep.subr.mxu0 0.0
    %115 = vmatpush1.msra.mxu0 0.0
    %116 = vmatprep.subr.mxu0 0.0
    %117 = vmatpush1.msra.mxu0 0.0
    %118 = vmatprep.subr.mxu0 0.0
    %119 = vmatpush1.msra.mxu0 0.0
    %120 = vmatprep.subr.mxu0 0.0
    %121 = vmatpush1.msra.mxu0 0.0
    %122 = vmatprep.subr.mxu0 0.0
    %123 = vmatpush1.msra.mxu0 0.0
    %124 = vmatprep.subr.mxu0 0.0
    %125 = vmatpush1.msra.mxu0 0.0
    %126 = vmatprep.subr.mxu0 0.0
    %127 = vmatpush1.msra.mxu0 0.0
    %128 = vmatprep.subr.mxu0 0.0
    %129 = vmatpush1.msra.mxu0 0.0
    %130 = vmatprep.subr.mxu0 0.0
    %131 = vmatpush1.msra.mxu0 0.0
    %132 = vmatprep.subr.mxu0 0.0
    %133 = vmatpush1.msra.mxu0 0.0
    %134 = vmatprep.subr.mxu0 0.0
    %135 = vmatpush1.msra.mxu0 0.0
    %136 = vmatprep.subr.mxu0 0.0
    %137 = vmatpush1.msra.mxu0 0.0
    %138 = vmatprep.mubr.f32.mxu0 0.0
    %139 = vmatmul.mubr.f32.gmra.mrb[0].mxu0 %v59
    %v140 = vpop.f32.mrb[0].mxu0
    %v141 = vadd.f32 %v40, %v140
    %v142 = vpop.f32.mrb[0].mxu0
    %143 = vmatprep.mubr.f32.mxu0 0.0
    %144 = vmatmul.mubr.f32.gmra.mrb[0].mxu0 %v62
    %v145 = vpop.f32.mrb[0].mxu0
    %v146 = vadd.f32 %v45, %v145
    %v147 = vpop.f32.mrb[0].mxu0
    %148 = vmatprep.mubr.f32.mxu0 0.0
    %149 = vmatmul.mubr.f32.gmra.mrb[0].mxu0 %v65
    %v150 = vpop.f32.mrb[0].mxu0
    %v151 = vadd.f32 %v50, %v150
    %v152 = vpop.f32.mrb[0].mxu0
    %153 = vmatprep.mubr.f32.mxu0 0.0
    %154 = vmatmul.mubr.f32.gmra.mrb[0].mxu0 %v68
    %v155 = vpop.f32.mrb[0].mxu0
    %v156 = vadd.f32 %v55, %v155
    %v157 = vpop.f32.mrb[0].mxu0
    %158 = vdwg.mxu0
    %v159 = vmax.f32 %v141, 0.0
    %v160 = vmax.f32 %v146, 0.0
    %v161 = vmax.f32 %v151, 0.0
    %v162 = vmax.f32 %v156, 0.0
    %v163 = vld [vmem:[%s3] sm:$0xff]
    %v164 = vld [vmem:[%s3 + $0x8] sm:$0xff]
    %v165 = vld [vmem:[%s3 + $0x10] sm:$0xff]
    %v166 = vld [vmem:[%s3 + $0x18] sm:$0xff]
    %v167 = vld [vmem:[%s4] sm:$0xff]
    %v168 = vld [vmem:[%s4 + $0x8] sm:$0xff]
    %v169 = vld [vmem:[%s4 + $0x10] sm:$0xff]
    %v170 = vld [vmem:[%s4 + $0x18] sm:$0xff]
    %172 = vset.pattern.permute.xlu0 0
    %173 = vperm.xlu0 %172, %v167
    %v174 = vpop.permute.xlu0 %173
    %177 = vset.pattern.permute.xlu0 0
    %178 = vperm.xlu0 %177, %v168
    %v179 = vpop.permute.xlu0 %178
    %182 = vset.pattern.permute.xlu0 0
    %183 = vperm.xlu0 %182, %v169
    %v184 = vpop.permute.xlu0 %183
    %187 = vset.pattern.permute.xlu0 0
    %188 = vperm.xlu0 %187, %v170
    %v189 = vpop.permute.xlu0 %188
    %vm191 = vcmask 261120
    %v193 = vsel %vm191, %v163, 0
    %v196 = vsel %vm191, %v164, 0
    %v199 = vsel %vm191, %v165, 0
    %v202 = vsel %vm191, %v166, 0
    %204 = vmatprep.subr.mxu0 0.0
    %205 = vmatpush1.msra.mxu0 %v159
    %206 = vmatprep.subr.mxu0 0.0
    %207 = vmatpush1.msra.mxu0 %v160
    %208 = vmatprep.subr.mxu0 0.0
    %209 = vmatpush1.msra.mxu0 %v161
    %210 = vmatprep.subr.mxu0 0.0
    %211 = vmatpush1.msra.mxu0 %v162
    %212 = vmatprep.subr.mxu0 0.0
    %213 = vmatpush1.msra.mxu0 0.0
    %214 = vmatprep.subr.mxu0 0.0
    %215 = vmatpush1.msra.mxu0 0.0
    %216 = vmatprep.subr.mxu0 0.0
    %217 = vmatpush1.msra.mxu0 0.0
    %218 = vmatprep.subr.mxu0 0.0
    %219 = vmatpush1.msra.mxu0 0.0
    %220 = vmatprep.subr.mxu0 0.0
    %221 = vmatpush1.msra.mxu0 0.0
    %222 = vmatprep.subr.mxu0 0.0
    %223 = vmatpush1.msra.mxu0 0.0
    %224 = vmatprep.subr.mxu0 0.0
    %225 = vmatpush1.msra.mxu0 0.0
    %226 = vmatprep.subr.mxu0 0.0
    %227 = vmatpush1.msra.mxu0 0.0
    %228 = vmatprep.subr.mxu0 0.0
    %229 = vmatpush1.msra.mxu0 0.0
    %230 = vmatprep.subr.mxu0 0.0
    %231 = vmatpush1.msra.mxu0 0.0
    %232 = vmatprep.subr.mxu0 0.0
    %233 = vmatpush1.msra.mxu0 0.0
    %234 = vmatprep.subr.mxu0 0.0
    %235 = vmatpush1.msra.mxu0 0.0
    %236 = vmatprep.subr.mxu0 0.0
    %237 = vmatpush1.msra.mxu0 0.0
    %238 = vmatprep.subr.mxu0 0.0
    %239 = vmatpush1.msra.mxu0 0.0
    %240 = vmatprep.subr.mxu0 0.0
    %241 = vmatpush1.msra.mxu0 0.0
    %242 = vmatprep.subr.mxu0 0.0
    %243 = vmatpush1.msra.mxu0 0.0
    %244 = vmatprep.subr.mxu0 0.0
    %245 = vmatpush1.msra.mxu0 0.0
    %246 = vmatprep.subr.mxu0 0.0
    %247 = vmatpush1.msra.mxu0 0.0
    %248 = vmatprep.subr.mxu0 0.0
    %249 = vmatpush1.msra.mxu0 0.0
    %250 = vmatprep.subr.mxu0 0.0
    %251 = vmatpush1.msra.mxu0 0.0
    %252 = vmatprep.subr.mxu0 0.0
    %253 = vmatpush1.msra.mxu0 0.0
    %254 = vmatprep.subr.mxu0 0.0
    %255 = vmatpush1.msra.mxu0 0.0
    %256 = vmatprep.subr.mxu0 0.0
    %257 = vmatpush1.msra.mxu0 0.0
    %258 = vmatprep.subr.mxu0 0.0
    %259 = vmatpush1.msra.mxu0 0.0
    %260 = vmatprep.subr.mxu0 0.0
    %261 = vmatpush1.msra.mxu0 0.0
    %262 = vmatprep.subr.mxu0 0.0
    %263 = vmatpush1.msra.mxu0 0.0
    %264 = vmatprep.subr.mxu0 0.0
    %265 = vmatpush1.msra.mxu0 0.0
    %266 = vmatprep.subr.mxu0 0.0
    %267 = vmatpush1.msra.mxu0 0.0
    %268 = vmatprep.mubr.f32.mxu0 0.0
    %269 = vmatmul.mubr.f32.gmra.mrb[0].mxu0 %v193
    %v270 = vpop.f32.mrb[0].mxu0
    %v271 = vadd.f32 %v174, %v270
    %v272 = vpop.f32.mrb[0].mxu0
    %273 = vmatprep.mubr.f32.mxu0 0.0
    %274 = vmatmul.mubr.f32.gmra.mrb[0].mxu0 %v196
    %v275 = vpop.f32.mrb[0].mxu0
    %v276 = vadd.f32 %v179, %v275
    %v277 = vpop.f32.mrb[0].mxu0
    %278 = vmatprep.mubr.f32.mxu0 0.0
    %279 = vmatmul.mubr.f32.gmra.mrb[0].mxu0 %v199
    %v280 = vpop.f32.mrb[0].mxu0
    %v281 = vadd.f32 %v184, %v280
    %v282 = vpop.f32.mrb[0].mxu0
    %283 = vmatprep.mubr.f32.mxu0 0.0
    %284 = vmatmul.mubr.f32.gmra.mrb[0].mxu0 %v202
    %v285 = vpop.f32.mrb[0].mxu0
    %v286 = vadd.f32 %v189, %v285
    %v287 = vpop.f32.mrb[0].mxu0
    %288 = vdwg.mxu0
    %v289 = vmax.f32 %v271, 0.0
    %v290 = vmax.f32 %v276, 0.0
    %v291 = vmax.f32 %v281, 0.0
    %v292 = vmax.f32 %v286, 0.0
    %v293 = vld [vmem:[%s5] sm:$0xff]
    %v294 = vld [vmem:[%s5 + $0x8] sm:$0xff]
    %v295 = vld [vmem:[%s5 + $0x10] sm:$0xff]
    %v296 = vld [vmem:[%s5 + $0x18] sm:$0xff]
    %298 = vset.pattern.permute.xlu0 0
    %299 = vperm.xlu0 %298, %v293
    %v300 = vpop.permute.xlu0 %299
    %303 = vset.pattern.permute.xlu0 0
    %304 = vperm.xlu0 %303, %v294
    %v305 = vpop.permute.xlu0 %304
    %308 = vset.pattern.permute.xlu0 0
    %309 = vperm.xlu0 %308, %v295
    %v310 = vpop.permute.xlu0 %309
    %313 = vset.pattern.permute.xlu0 0
    %314 = vperm.xlu0 %313, %v296
    %v315 = vpop.permute.xlu0 %314
    %v317 = vmul.f32 %v289, %v300
    %v318 = vmul.f32 %v290, %v305
    %v319 = vmul.f32 %v291, %v310
    %v320 = vmul.f32 %v292, %v315
    %v321 = vadd.f32 %v317, %v318
    %v322 = vadd.f32 %v321, %v319
    %v323 = vadd.f32 %v322, %v320
    %v324 = vrot.slane %v323, 4
    %v325 = vadd.f32 %v323, %v324
    %v326 = vrot.slane %v325, 2
    %v327 = vadd.f32 %v325, %v326
    %v328 = vrot.slane %v327, 1
    %v329 = vadd.f32 %v327, %v328
    %s330 = sld [smem:[#allocation2]]
    %v331 = vstv %s330
    %v332 = vadd.f32 %v329, %v331
    %v333 = vmul.f32 %v332, 1.442695
    %v334 = vpow.pop %v333
    %v335 = vadd.f32 %v334, 1e-12
    %336 = vst [vmem:[#allocation3] sm:$0x1] %v335
    // Predicated region
    $region30: #{tpu_custom_call.1} parent=1 // pred_check
      _
    $region31: #{tpu_custom_call.1} parent=1 // pred_check_branch
      %338 = sbr.rel (0) target = $region33
    $region32: #{tpu_custom_call.1} parent=1 // pred_region
      %s340 = ssub.s32 16, 16
      %341 = vsyncadd [#allocation4], %s340
      %s343 = sshll.u32 [#allocation3], 4
      %s344 = int_to_ptr.vmem [resolvable:$true] %s343
      %346 = dma.vmem_to_hbm [thread:$0]  %s344, 16, %s7, [#allocation4]
    $region33: #{tpu_custom_call.1} parent=1 // pred_fallthru
      _
    // Predicated region
    $region34: #{tpu_custom_call.1} parent=1 // pred_check
      _
    $region35: #{tpu_custom_call.1} parent=1 // pred_check_branch
      %348 = sbr.rel (0) target = $region37
    $region36: #{tpu_custom_call.1} parent=1 // pred_region
      %349 = dma.done [#allocation4], 16
    $region37: #{tpu_custom_call.1} parent=1 // pred_fallthru
      _
    %350 = vsyncpa [#allocation4], 1

</llo_original>
